<compile_context>
chip_gen: v7x
topology: tpu7x:2x2x1
jax: 0.10.0
libtpu: 0.0.40
codegen_flags: <defaults>
</compile_context>

<pallas_src>
import functools

import jax
import jax.numpy as jnp
from jax.experimental import pallas as pl
from jax.experimental.pallas import tpu as pltpu


LANE = 128
SUBLANE = 8


def _round_up(x, m):
    return (x + m - 1) // m * m


def _mlp_kernel(n_layers, out_rows, *refs):
    """Whole-MLP kernel for one batch tile.

    refs = (x_ref, W0, b0, W1, b1, ..., W_{L-1}, b_{L-1}, out_ref)
    Weights are compute-dtype (bf16), biases f32; accumulation is f32.
    ReLU after every layer except the last (dropout is identity at inference).
    The final result is transposed (XLU) and only `out_rows` rows are stored.
    """
    x_ref = refs[0]
    out_ref = refs[-1]
    wb = refs[1:-1]

    h = x_ref[...]                                    # (TM, F_pad) compute dtype
    for i in range(n_layers):
        w = wb[2 * i][...]                            # (in_pad, out_pad)
        b = wb[2 * i + 1][...]                        # (1, out_pad) f32
        acc = jnp.dot(h, w, preferred_element_type=jnp.float32) + b
        if i < n_layers - 1:
            # ReLU in f32 (safe on v5e), activation carried in compute dtype.
            h = jnp.maximum(acc, 0.0).astype(w.dtype)
        else:
            ht = acc.T                                # (out_pad, TM), XLU slot
            out_ref[...] = ht[:out_rows, :].astype(out_ref.dtype)


def prepare_params(params, compute_dtype=jnp.bfloat16):
    """One-time padding/casting of PyTorch-style (W, b) params.

    params: list of (W, b), W: (in, out), b: (1, out), f32.
    Returns (flat_params, info) where flat_params = [W0, b0, W1, b1, ...]
    with lane dims padded to multiples of 128 and W cast to compute_dtype.
    """
    n_features = params[0][0].shape[0]
    out_dim = params[-1][0].shape[1]
    f_pad = _round_up(n_features, LANE)

    flat = []
    in_pad = f_pad
    max_pad = f_pad
    for (w, b) in params:
        fi, fo = w.shape
        fo_pad = _round_up(fo, LANE)
        wp = jnp.zeros((in_pad, fo_pad), compute_dtype)
        wp = wp.at[:fi, :fo].set(w.astype(compute_dtype))
        bp = jnp.zeros((1, fo_pad), jnp.float32)
        bp = bp.at[:, :fo].set(b.astype(jnp.float32))
        flat += [wp, bp]
        in_pad = fo_pad
        max_pad = max(max_pad, fo_pad)

    info = dict(
        n_layers=len(params),
        n_features=n_features,
        out_dim=out_dim,
        f_pad=f_pad,
        out_pad=in_pad,
        max_pad=max_pad,
        compute_dtype=compute_dtype,
    )
    return flat, info


def feedforward_forward(x, flat_params, info, *, tile_m=1024):
    """MLP forward as a single Pallas TPU kernel.

    x: (batch, n_features) f32.  Returns (batch, out_dim) f32.
    """
    batch, n_features = x.shape
    assert n_features == info["n_features"]
    compute_dtype = info["compute_dtype"]
    f_pad = info["f_pad"]
    out_pad = info["out_pad"]
    out_dim = info["out_dim"]
    n_layers = info["n_layers"]
    out_rows = min(out_pad, _round_up(out_dim, SUBLANE))

    itemsize_c = jnp.dtype(compute_dtype).itemsize
    weight_bytes = sum(int(a.size) * a.dtype.itemsize for a in flat_params)

    # ---- VMEM budget: cap at ~85% of physical VMEM of this generation -------
    try:
        phys_vmem = int(pltpu.get_tpu_info().vmem_capacity_bytes)
    except Exception:  # pragma: no cover - conservative fallback (v7x per-core)
        phys_vmem = 64 * 1024 * 1024
    vmem_cap = int(phys_vmem * 0.85)

    def vmem_estimate(tm):
        est = weight_bytes                              # single resident copy
        est += 2 * tm * f_pad * itemsize_c              # streamed x tile (x2 buf)
        est += 2 * out_rows * tm * 4                    # streamed out tile (x2 buf)
        est += tm * info["max_pad"] * (4 + itemsize_c)  # live f32 acc + bf16 act
        return int(est * 1.25) + (1 << 20)

    # TM: multiple of 128 (lane-dense transposed output store, full bf16 packing).
    tm = max(LANE, min(_round_up(int(tile_m), LANE), _round_up(batch, LANE)))
    while tm > LANE and vmem_estimate(tm) > vmem_cap:
        tm = _round_up(tm // 2, LANE)
    # TODO(synk): if even tm=128 exceeds the cap (huge hidden/layer counts on
    # v7x), switch to a weight-streaming plan (hidden-dim grid axis + f32 VMEM
    # accumulator with pl.when init/finalize) instead of weight-resident VMEM.
    vmem_limit = int(min(max(vmem_estimate(tm), 32 * 1024 * 1024), vmem_cap))

    batch_pad = _round_up(batch, tm)
    grid = (batch_pad // tm,)

    # ---- Input padding (skipped when already aligned) ------------------------
    if batch_pad == batch and f_pad == n_features:
        xp = x.astype(compute_dtype)
    else:
        xp = jnp.zeros((batch_pad, f_pad), compute_dtype)
        xp = xp.at[:batch, :n_features].set(x.astype(compute_dtype))

    # ---- Block specs ---------------------------------------------------------
    in_specs = [pl.BlockSpec((tm, f_pad), lambda i: (i, 0))]       # streamed x
    in_specs += [
        pl.BlockSpec(memory_space=pltpu.MemorySpace.VMEM)          # resident W/b
        for _ in flat_params
    ]
    out_specs = pl.BlockSpec((out_rows, tm), lambda i: (0, i))     # (8, TM) slab

    out_padded = pl.pallas_call(
        functools.partial(_mlp_kernel, n_layers, out_rows),
        out_shape=jax.ShapeDtypeStruct((out_rows, batch_pad), jnp.float32),
        grid=grid,
        in_specs=in_specs,
        out_specs=out_specs,
        compiler_params=pltpu.CompilerParams(
            dimension_semantics=("parallel",),
            vmem_limit_bytes=vmem_limit,
        ),
    )(xp, *flat_params)

    return out_padded[:out_dim, :batch].T


def init_params(key, n_features, hidden_size, layers):
    """Deterministic init mirroring the PyTorch module's layer shapes.

    Returns a list of (W, b) with W: (in, out), b: (1, out).
    Layer sequence: n_features->hidden, (layers-1) x hidden->hidden, hidden->1.
    """
    dims = [n_features] + [hidden_size] * layers + [1]
    params = []
    for i in range(len(dims) - 1):
        fan_in, fan_out = dims[i], dims[i + 1]
        key, kw, kb = jax.random.split(key, 3)
        bound = 1.0 / jnp.sqrt(jnp.float32(fan_in))
        w = jax.random.uniform(kw, (fan_in, fan_out), jnp.float32, -bound, bound)
        b = jax.random.uniform(kb, (1, fan_out), jnp.float32, -bound, bound)
        params.append((w, b))
    return params


def reference_forward(x, params, compute_dtype=jnp.bfloat16):
    """Pure-JAX reference using the same bf16-operand / f32-accumulate recipe."""
    h = x.astype(compute_dtype)
    for i, (w, b) in enumerate(params):
        h = jnp.dot(h.astype(compute_dtype), w.astype(compute_dtype),
                    preferred_element_type=jnp.float32) + b.astype(jnp.float32)
        if i < len(params) - 1:
            h = jnp.maximum(h, 0.0)
    return h


if __name__ == "__main__":
    # Small shapes consistent with the module's forward.  batch=300 with
    # tile_m=128 gives a 3-step grid (multi-tile pipelined path), a non-aligned
    # batch (padding exercised) and non-128 feature/hidden dims (lane padding
    # exercised).
    batch = 300
    n_features = 16
    hidden_size = 32
    layers = 3          # first layer + (layers-1)=2 hidden layers + output layer
    dropout = 0.25      # identity at inference time

    key = jax.random.PRNGKey(0)
    key, kx = jax.random.split(key)
    x = jax.random.normal(kx, (batch, n_features), jnp.float32)

    params = init_params(key, n_features, hidden_size, layers)
    flat_params, info = prepare_params(params, compute_dtype=jnp.bfloat16)

    fwd = jax.jit(lambda xx, fp: feedforward_forward(xx, fp, info, tile_m=128))
    out = jax.block_until_ready(fwd(x, flat_params))

    ref = reference_forward(x, params, compute_dtype=jnp.bfloat16)
    assert out.shape == (batch, 1), out.shape
    max_err = jnp.max(jnp.abs(out - ref))
    assert jnp.allclose(out, ref, atol=2e-3, rtol=2e-3), f"max abs err {max_err}"

    print("KERNEL_OK")
</pallas_src>

<mosaic_0001>
module attributes {stable_mosaic.version = 11 : i64} {
  func.func @_mlp_kernel(%arg0: i32, %arg1: memref<128x128xbf16, #tpu.memory_space<vmem>>, %arg2: memref<128x128xbf16, #tpu.memory_space<vmem>>, %arg3: memref<1x128xf32, #tpu.memory_space<vmem>>, %arg4: memref<128x128xbf16, #tpu.memory_space<vmem>>, %arg5: memref<1x128xf32, #tpu.memory_space<vmem>>, %arg6: memref<128x128xbf16, #tpu.memory_space<vmem>>, %arg7: memref<1x128xf32, #tpu.memory_space<vmem>>, %arg8: memref<128x128xbf16, #tpu.memory_space<vmem>>, %arg9: memref<1x128xf32, #tpu.memory_space<vmem>>, %arg10: memref<8x128xf32, #tpu.memory_space<vmem>>) attributes {dimension_semantics = [#tpu.dimension_semantics<parallel>], iteration_bounds = array<i64: 3>, scalar_prefetch = 0 : i64, scratch_operands = 0 : i64, tpu.core_type = #tpu.core_type<tc>, window_params = [{transform_indices = @transform_0, window_bounds = array<i64: 128, 128>}, {pipeline_mode = #tpu.pipeline_mode<synchronous>, transform_indices = @transform_1, window_bounds = array<i64: 128, 128>}, {pipeline_mode = #tpu.pipeline_mode<synchronous>, transform_indices = @transform_2, window_bounds = array<i64: 1, 128>}, {pipeline_mode = #tpu.pipeline_mode<synchronous>, transform_indices = @transform_3, window_bounds = array<i64: 128, 128>}, {pipeline_mode = #tpu.pipeline_mode<synchronous>, transform_indices = @transform_4, window_bounds = array<i64: 1, 128>}, {pipeline_mode = #tpu.pipeline_mode<synchronous>, transform_indices = @transform_5, window_bounds = array<i64: 128, 128>}, {pipeline_mode = #tpu.pipeline_mode<synchronous>, transform_indices = @transform_6, window_bounds = array<i64: 1, 128>}, {pipeline_mode = #tpu.pipeline_mode<synchronous>, transform_indices = @transform_7, window_bounds = array<i64: 128, 128>}, {pipeline_mode = #tpu.pipeline_mode<synchronous>, transform_indices = @transform_8, window_bounds = array<i64: 1, 128>}, {transform_indices = @transform_9, window_bounds = array<i64: 8, 128>}]} {
    %c0 = arith.constant 0 : index
    %c0_0 = arith.constant 0 : index
    %0 = vector.load %arg1[%c0, %c0_0] : memref<128x128xbf16, #tpu.memory_space<vmem>>, vector<128x128xbf16>
    %c0_1 = arith.constant 0 : index
    %c0_2 = arith.constant 0 : index
    %1 = vector.load %arg2[%c0_1, %c0_2] : memref<128x128xbf16, #tpu.memory_space<vmem>>, vector<128x128xbf16>
    %c0_3 = arith.constant 0 : index
    %c0_4 = arith.constant 0 : index
    %2 = vector.load %arg3[%c0_3, %c0_4] : memref<1x128xf32, #tpu.memory_space<vmem>>, vector<1x128xf32>
    %cst = arith.constant dense<0.000000e+00> : vector<128x128xf32>
    %3 = tpu.matmul %0, %1, %cst {dimension_numbers = #tpu.dot_dimension_numbers<[1], [0], [0], [1], [0, 0, 1, 1], [], []>} : vector<128x128xbf16>, vector<128x128xbf16>, vector<128x128xf32> -> vector<128x128xf32>
    %4 = vector.broadcast %2 : vector<1x128xf32> to vector<128x128xf32>
    %5 = arith.addf %3, %4 : vector<128x128xf32>
    %cst_5 = arith.constant 0.000000e+00 : f32
    %6 = vector.broadcast %cst_5 : f32 to vector<128x128xf32>
    %7 = arith.maximumf %5, %6 : vector<128x128xf32>
    %8 = arith.truncf %7 : vector<128x128xf32> to vector<128x128xbf16>
    %c0_6 = arith.constant 0 : index
    %c0_7 = arith.constant 0 : index
    %9 = vector.load %arg4[%c0_6, %c0_7] : memref<128x128xbf16, #tpu.memory_space<vmem>>, vector<128x128xbf16>
    %c0_8 = arith.constant 0 : index
    %c0_9 = arith.constant 0 : index
    %10 = vector.load %arg5[%c0_8, %c0_9] : memref<1x128xf32, #tpu.memory_space<vmem>>, vector<1x128xf32>
    %cst_10 = arith.constant dense<0.000000e+00> : vector<128x128xf32>
    %11 = tpu.matmul %8, %9, %cst_10 {dimension_numbers = #tpu.dot_dimension_numbers<[1], [0], [0], [1], [0, 0, 1, 1], [], []>} : vector<128x128xbf16>, vector<128x128xbf16>, vector<128x128xf32> -> vector<128x128xf32>
    %12 = vector.broadcast %10 : vector<1x128xf32> to vector<128x128xf32>
    %13 = arith.addf %11, %12 : vector<128x128xf32>
    %cst_11 = arith.constant 0.000000e+00 : f32
    %14 = vector.broadcast %cst_11 : f32 to vector<128x128xf32>
    %15 = arith.maximumf %13, %14 : vector<128x128xf32>
    %16 = arith.truncf %15 : vector<128x128xf32> to vector<128x128xbf16>
    %c0_12 = arith.constant 0 : index
    %c0_13 = arith.constant 0 : index
    %17 = vector.load %arg6[%c0_12, %c0_13] : memref<128x128xbf16, #tpu.memory_space<vmem>>, vector<128x128xbf16>
    %c0_14 = arith.constant 0 : index
    %c0_15 = arith.constant 0 : index
    %18 = vector.load %arg7[%c0_14, %c0_15] : memref<1x128xf32, #tpu.memory_space<vmem>>, vector<1x128xf32>
    %cst_16 = arith.constant dense<0.000000e+00> : vector<128x128xf32>
    %19 = tpu.matmul %16, %17, %cst_16 {dimension_numbers = #tpu.dot_dimension_numbers<[1], [0], [0], [1], [0, 0, 1, 1], [], []>} : vector<128x128xbf16>, vector<128x128xbf16>, vector<128x128xf32> -> vector<128x128xf32>
    %20 = vector.broadcast %18 : vector<1x128xf32> to vector<128x128xf32>
    %21 = arith.addf %19, %20 : vector<128x128xf32>
    %cst_17 = arith.constant 0.000000e+00 : f32
    %22 = vector.broadcast %cst_17 : f32 to vector<128x128xf32>
    %23 = arith.maximumf %21, %22 : vector<128x128xf32>
    %24 = arith.truncf %23 : vector<128x128xf32> to vector<128x128xbf16>
    %c0_18 = arith.constant 0 : index
    %c0_19 = arith.constant 0 : index
    %25 = vector.load %arg8[%c0_18, %c0_19] : memref<128x128xbf16, #tpu.memory_space<vmem>>, vector<128x128xbf16>
    %c0_20 = arith.constant 0 : index
    %c0_21 = arith.constant 0 : index
    %26 = vector.load %arg9[%c0_20, %c0_21] : memref<1x128xf32, #tpu.memory_space<vmem>>, vector<1x128xf32>
    %cst_22 = arith.constant dense<0.000000e+00> : vector<128x128xf32>
    %27 = tpu.matmul %24, %25, %cst_22 {dimension_numbers = #tpu.dot_dimension_numbers<[1], [0], [0], [1], [0, 0, 1, 1], [], []>} : vector<128x128xbf16>, vector<128x128xbf16>, vector<128x128xf32> -> vector<128x128xf32>
    %28 = vector.broadcast %26 : vector<1x128xf32> to vector<128x128xf32>
    %29 = arith.addf %27, %28 : vector<128x128xf32>
    %30 = tpu.transpose %29, [1, 0] : vector<128x128xf32> -> vector<128x128xf32>
    %31 = vector.extract_strided_slice %30 {offsets = [0, 0], sizes = [8, 128], strides = [1, 1]} : vector<128x128xf32> to vector<8x128xf32>
    %c0_23 = arith.constant 0 : index
    %c0_24 = arith.constant 0 : index
    %32 = vector.load %arg10[%c0_23, %c0_24] : memref<8x128xf32, #tpu.memory_space<vmem>>, vector<8x128xf32>
    tpu.vector_store %arg10[%c0_23, %c0_24], %31 {strides = array<i32>} : memref<8x128xf32, #tpu.memory_space<vmem>>, vector<8x128xf32>,
    return
  }
  func.func @transform_0(%arg0: i32) -> (i32, i32) {
    %c0_i32 = arith.constant 0 : i32
    %c0_i32_0 = arith.constant 0 : i32
    return %arg0, %c0_i32 : i32, i32
  }
  func.func @transform_1(%arg0: i32) -> (i32, i32) {
    %c0_i32 = arith.constant 0 : i32
    %c0_i32_0 = arith.constant 0 : i32
    %c0_i32_1 = arith.constant 0 : i32
    return %c0_i32, %c0_i32_0 : i32, i32
  }
  func.func @transform_2(%arg0: i32) -> (i32, i32) {
    %c0_i32 = arith.constant 0 : i32
    %c0_i32_0 = arith.constant 0 : i32
    %c0_i32_1 = arith.constant 0 : i32
    return %c0_i32, %c0_i32_0 : i32, i32
  }
  func.func @transform_3(%arg0: i32) -> (i32, i32) {
    %c0_i32 = arith.constant 0 : i32
    %c0_i32_0 = arith.constant 0 : i32
    %c0_i32_1 = arith.constant 0 : i32
    return %c0_i32, %c0_i32_0 : i32, i32
  }
  func.func @transform_4(%arg0: i32) -> (i32, i32) {
    %c0_i32 = arith.constant 0 : i32
    %c0_i32_0 = arith.constant 0 : i32
    %c0_i32_1 = arith.constant 0 : i32
    return %c0_i32, %c0_i32_0 : i32, i32
  }
  func.func @transform_5(%arg0: i32) -> (i32, i32) {
    %c0_i32 = arith.constant 0 : i32
    %c0_i32_0 = arith.constant 0 : i32
    %c0_i32_1 = arith.constant 0 : i32
    return %c0_i32, %c0_i32_0 : i32, i32
  }
  func.func @transform_6(%arg0: i32) -> (i32, i32) {
    %c0_i32 = arith.constant 0 : i32
    %c0_i32_0 = arith.constant 0 : i32
    %c0_i32_1 = arith.constant 0 : i32
    return %c0_i32, %c0_i32_0 : i32, i32
  }
  func.func @transform_7(%arg0: i32) -> (i32, i32) {
    %c0_i32 = arith.constant 0 : i32
    %c0_i32_0 = arith.constant 0 : i32
    %c0_i32_1 = arith.constant 0 : i32
    return %c0_i32, %c0_i32_0 : i32, i32
  }
  func.func @transform_8(%arg0: i32) -> (i32, i32) {
    %c0_i32 = arith.constant 0 : i32
    %c0_i32_0 = arith.constant 0 : i32
    %c0_i32_1 = arith.constant 0 : i32
    return %c0_i32, %c0_i32_0 : i32, i32
  }
  func.func @transform_9(%arg0: i32) -> (i32, i32) {
    %c0_i32 = arith.constant 0 : i32
    %c0_i32_0 = arith.constant 0 : i32
    return %c0_i32, %arg0 : i32, i32
  }
}

</mosaic_0001>

<llo_original>
// kernel: _lambda_.1
$region0: #{_lambda_.1}
  #allocation0 [shape = 'u32[]', space=smem, size = 0x4, offset = 0x4, fixed_abs, tag = 'smem constant byte address 0x4 - core index']
  #allocation1 [shape = 'u32[144,128]{1,0:T(1,128)}', space=vmem, size = 0x12000, scoped, tag = 'internal scratch']
  %s0 = inlined_call_operand.vmem [shape: bf16[384,128], index: 0, kind: input, shape index: {}]
  %s1 = inlined_call_operand.vmem [shape: bf16[128,128], index: 1, kind: input, shape index: {}]
  %s2 = inlined_call_operand.vmem [shape: f32[1,128], index: 2, kind: input, shape index: {}]
  %s3 = inlined_call_operand.vmem [shape: bf16[128,128], index: 3, kind: input, shape index: {}]
  %s4 = inlined_call_operand.vmem [shape: f32[1,128], index: 4, kind: input, shape index: {}]
  %s5 = inlined_call_operand.vmem [shape: bf16[128,128], index: 5, kind: input, shape index: {}]
  %s6 = inlined_call_operand.vmem [shape: f32[1,128], index: 6, kind: input, shape index: {}]
  %s7 = inlined_call_operand.vmem [shape: bf16[128,128], index: 7, kind: input, shape index: {}]
  %s8 = inlined_call_operand.vmem [shape: f32[1,128], index: 8, kind: input, shape index: {}]
  %s9 = inlined_call_operand.vmem [shape: f32[8,384], index: 9, kind: output, shape index: {}]
  %s10 = sld [smem:[#allocation0]]
  $region69: #{_lambda_.1} parent=0
    _
  %s12 = ssub.s32 1, %s10
  %s13 = scalar_select 0, %s12, %s10
  loop: start=0, step=1, limit=5
  $region2: #{_lambda_.1} parent=0 // loop_pre_header
    _
  $region3: #{_lambda_.1} parent=0 // loop_header
    %s15 = sphi 0, %s19
    %p16 = scmp.ge.s32.totalorder %s15, 5
    %s25 = sphi 0, %s27
    %s28 = sphi 0, %s25
    %s29 = sphi 0, %s28
    %s45 = sphi 0, %s29
    %s49 = sphi 0, %s49
    %s51 = sphi 0, %s49
    %s52 = sphi 0, %s51
    %s66 = sphi 0, %s52
    %s70 = sphi 0, %s70
    %s72 = sphi 0, %s70
    %s73 = sphi 0, %s72
    %s87 = sphi 0, %s73
    %s91 = sphi 0, %s91
    %s93 = sphi 0, %s91
    %s94 = sphi 0, %s93
    %s108 = sphi 0, %s94
    %s112 = sphi 0, %s112
    %s114 = sphi 0, %s112
    %s115 = sphi 0, %s114
    %s129 = sphi 0, %s115
    %s133 = sphi 0, %s133
    %s135 = sphi 0, %s133
    %s136 = sphi 0, %s135
    %s150 = sphi 0, %s136
    %s154 = sphi 0, %s154
    %s156 = sphi 0, %s154
    %s157 = sphi 0, %s156
    %s171 = sphi 0, %s157
    %s175 = sphi 0, %s175
    %s177 = sphi 0, %s175
    %s178 = sphi 0, %s177
    %s192 = sphi 0, %s178
    %s196 = sphi 0, %s196
    %s198 = sphi 0, %s196
    %s199 = sphi 0, %s198
    %s213 = sphi 0, %s199
    %s219 = sphi 0, %s221
    %s222 = sphi 0, %s219
    %s223 = sphi 0, %s222
    %s239 = sphi 0, %s223
  $region4: #{_lambda_.1} parent=0 // loop_header_branch
    %18 = sbr.rel (%p16) target = $region8
  $region5: #{_lambda_.1} parent=0 // loop_body
    %s20 = ssub.s32 %s15, 1
    %s21 = ssub.s32 %s15, 2
    %s22 = sadd.s32 %s15, 1
    %s23 = ssub.s32 %s15, %s22
    %p24 = scmp.eq.s32.totalorder %s23, 0
    %s26 = sadd.s32 %s25, 1
    %s27 = scalar_select %p24, %s25, %s26
    %p30 = pneg %p24
    %p31 = scmp.eq.s32.totalorder %s15, 2
    %p32 = por %p30, %p31
    %p33 = scmp.ne.s32.totalorder %s25, %s28
    %p34 = scmp.eq.s32.totalorder %s15, 0
    %p35 = por %p33, %p34
    %p36 = scmp.ne.s32.totalorder %s25, %s28
    %p37 = scmp.eq.s32.totalorder %s20, 2
    %p38 = por %p36, %p37
    %p39 = scmp.ne.s32.totalorder %s28, %s29
    %p40 = scmp.eq.s32.totalorder %s20, 0
    %p41 = por %p39, %p40
    %p42 = scmp.ne.s32.totalorder %s28, %s29
    %p43 = scmp.eq.s32.totalorder %s21, 2
    %p44 = por %p42, %p43
    %p46 = scmp.ne.s32.totalorder %s29, %s45
    %p47 = scmp.eq.s32.totalorder %s21, 0
    %p48 = por %p46, %p47
    %s50 = sadd.s32 %s49, 1
    %p53 = scmp.eq.s32.totalorder %s15, 2
    %p54 = scmp.ne.s32.totalorder %s49, %s51
    %p55 = scmp.eq.s32.totalorder %s15, 0
    %p56 = por %p54, %p55
    %p57 = scmp.ne.s32.totalorder %s49, %s51
    %p58 = scmp.eq.s32.totalorder %s20, 2
    %p59 = por %p57, %p58
    %p60 = scmp.ne.s32.totalorder %s51, %s52
    %p61 = scmp.eq.s32.totalorder %s20, 0
    %p62 = por %p60, %p61
    %p63 = scmp.ne.s32.totalorder %s51, %s52
    %p64 = scmp.eq.s32.totalorder %s21, 2
    %p65 = por %p63, %p64
    %p67 = scmp.ne.s32.totalorder %s52, %s66
    %p68 = scmp.eq.s32.totalorder %s21, 0
    %p69 = por %p67, %p68
    %s71 = sadd.s32 %s70, 1
    %p74 = scmp.eq.s32.totalorder %s15, 2
    %p75 = scmp.ne.s32.totalorder %s70, %s72
    %p76 = scmp.eq.s32.totalorder %s15, 0
    %p77 = por %p75, %p76
    %p78 = scmp.ne.s32.totalorder %s70, %s72
    %p79 = scmp.eq.s32.totalorder %s20, 2
    %p80 = por %p78, %p79
    %p81 = scmp.ne.s32.totalorder %s72, %s73
    %p82 = scmp.eq.s32.totalorder %s20, 0
    %p83 = por %p81, %p82
    %p84 = scmp.ne.s32.totalorder %s72, %s73
    %p85 = scmp.eq.s32.totalorder %s21, 2
    %p86 = por %p84, %p85
    %p88 = scmp.ne.s32.totalorder %s73, %s87
    %p89 = scmp.eq.s32.totalorder %s21, 0
    %p90 = por %p88, %p89
    %s92 = sadd.s32 %s91, 1
    %p95 = scmp.eq.s32.totalorder %s15, 2
    %p96 = scmp.ne.s32.totalorder %s91, %s93
    %p97 = scmp.eq.s32.totalorder %s15, 0
    %p98 = por %p96, %p97
    %p99 = scmp.ne.s32.totalorder %s91, %s93
    %p100 = scmp.eq.s32.totalorder %s20, 2
    %p101 = por %p99, %p100
    %p102 = scmp.ne.s32.totalorder %s93, %s94
    %p103 = scmp.eq.s32.totalorder %s20, 0
    %p104 = por %p102, %p103
    %p105 = scmp.ne.s32.totalorder %s93, %s94
    %p106 = scmp.eq.s32.totalorder %s21, 2
    %p107 = por %p105, %p106
    %p109 = scmp.ne.s32.totalorder %s94, %s108
    %p110 = scmp.eq.s32.totalorder %s21, 0
    %p111 = por %p109, %p110
    %s113 = sadd.s32 %s112, 1
    %p116 = scmp.eq.s32.totalorder %s15, 2
    %p117 = scmp.ne.s32.totalorder %s112, %s114
    %p118 = scmp.eq.s32.totalorder %s15, 0
    %p119 = por %p117, %p118
    %p120 = scmp.ne.s32.totalorder %s112, %s114
    %p121 = scmp.eq.s32.totalorder %s20, 2
    %p122 = por %p120, %p121
    %p123 = scmp.ne.s32.totalorder %s114, %s115
    %p124 = scmp.eq.s32.totalorder %s20, 0
    %p125 = por %p123, %p124
    %p126 = scmp.ne.s32.totalorder %s114, %s115
    %p127 = scmp.eq.s32.totalorder %s21, 2
    %p128 = por %p126, %p127
    %p130 = scmp.ne.s32.totalorder %s115, %s129
    %p131 = scmp.eq.s32.totalorder %s21, 0
    %p132 = por %p130, %p131
    %s134 = sadd.s32 %s133, 1
    %p137 = scmp.eq.s32.totalorder %s15, 2
    %p138 = scmp.ne.s32.totalorder %s133, %s135
    %p139 = scmp.eq.s32.totalorder %s15, 0
    %p140 = por %p138, %p139
    %p141 = scmp.ne.s32.totalorder %s133, %s135
    %p142 = scmp.eq.s32.totalorder %s20, 2
    %p143 = por %p141, %p142
    %p144 = scmp.ne.s32.totalorder %s135, %s136
    %p145 = scmp.eq.s32.totalorder %s20, 0
    %p146 = por %p144, %p145
    %p147 = scmp.ne.s32.totalorder %s135, %s136
    %p148 = scmp.eq.s32.totalorder %s21, 2
    %p149 = por %p147, %p148
    %p151 = scmp.ne.s32.totalorder %s136, %s150
    %p152 = scmp.eq.s32.totalorder %s21, 0
    %p153 = por %p151, %p152
    %s155 = sadd.s32 %s154, 1
    %p158 = scmp.eq.s32.totalorder %s15, 2
    %p159 = scmp.ne.s32.totalorder %s154, %s156
    %p160 = scmp.eq.s32.totalorder %s15, 0
    %p161 = por %p159, %p160
    %p162 = scmp.ne.s32.totalorder %s154, %s156
    %p163 = scmp.eq.s32.totalorder %s20, 2
    %p164 = por %p162, %p163
    %p165 = scmp.ne.s32.totalorder %s156, %s157
    %p166 = scmp.eq.s32.totalorder %s20, 0
    %p167 = por %p165, %p166
    %p168 = scmp.ne.s32.totalorder %s156, %s157
    %p169 = scmp.eq.s32.totalorder %s21, 2
    %p170 = por %p168, %p169
    %p172 = scmp.ne.s32.totalorder %s157, %s171
    %p173 = scmp.eq.s32.totalorder %s21, 0
    %p174 = por %p172, %p173
    %s176 = sadd.s32 %s175, 1
    %p179 = scmp.eq.s32.totalorder %s15, 2
    %p180 = scmp.ne.s32.totalorder %s175, %s177
    %p181 = scmp.eq.s32.totalorder %s15, 0
    %p182 = por %p180, %p181
    %p183 = scmp.ne.s32.totalorder %s175, %s177
    %p184 = scmp.eq.s32.totalorder %s20, 2
    %p185 = por %p183, %p184
    %p186 = scmp.ne.s32.totalorder %s177, %s178
    %p187 = scmp.eq.s32.totalorder %s20, 0
    %p188 = por %p186, %p187
    %p189 = scmp.ne.s32.totalorder %s177, %s178
    %p190 = scmp.eq.s32.totalorder %s21, 2
    %p191 = por %p189, %p190
    %p193 = scmp.ne.s32.totalorder %s178, %s192
    %p194 = scmp.eq.s32.totalorder %s21, 0
    %p195 = por %p193, %p194
    %s197 = sadd.s32 %s196, 1
    %p200 = scmp.eq.s32.totalorder %s15, 2
    %p201 = scmp.ne.s32.totalorder %s196, %s198
    %p202 = scmp.eq.s32.totalorder %s15, 0
    %p203 = por %p201, %p202
    %p204 = scmp.ne.s32.totalorder %s196, %s198
    %p205 = scmp.eq.s32.totalorder %s20, 2
    %p206 = por %p204, %p205
    %p207 = scmp.ne.s32.totalorder %s198, %s199
    %p208 = scmp.eq.s32.totalorder %s20, 0
    %p209 = por %p207, %p208
    %p210 = scmp.ne.s32.totalorder %s198, %s199
    %p211 = scmp.eq.s32.totalorder %s21, 2
    %p212 = por %p210, %p211
    %p214 = scmp.ne.s32.totalorder %s199, %s213
    %p215 = scmp.eq.s32.totalorder %s21, 0
    %p216 = por %p214, %p215
    %s217 = ssub.s32 %s15, %s22
    %p218 = scmp.eq.s32.totalorder %s217, 0
    %s220 = sadd.s32 %s219, 1
    %s221 = scalar_select %p218, %s219, %s220
    %p224 = pneg %p218
    %p225 = scmp.eq.s32.totalorder %s15, 2
    %p226 = por %p224, %p225
    %p227 = scmp.ne.s32.totalorder %s219, %s222
    %p228 = scmp.eq.s32.totalorder %s15, 0
    %p229 = por %p227, %p228
    %p230 = scmp.ne.s32.totalorder %s219, %s222
    %p231 = scmp.eq.s32.totalorder %s20, 2
    %p232 = por %p230, %p231
    %p233 = scmp.ne.s32.totalorder %s222, %s223
    %p234 = scmp.eq.s32.totalorder %s20, 0
    %p235 = por %p233, %p234
    %p236 = scmp.ne.s32.totalorder %s222, %s223
    %p237 = scmp.eq.s32.totalorder %s21, 2
    %p238 = por %p236, %p237
    %p240 = scmp.ne.s32.totalorder %s223, %s239
    %p241 = scmp.eq.s32.totalorder %s21, 0
    %p242 = por %p240, %p241
    %p243 = scmp.le.s32.totalorder 1, %s15
    %p244 = scmp.lt.s32.totalorder %s15, 4
    %p245 = pnand %p243, %p244
    %p246 = pneg %p245
    // Predicated region
    $region9: #{_lambda_.1} parent=5 // pred_check
      _
    $region10: #{_lambda_.1} parent=5 // pred_check_branch
      %248 = sbr.rel (%p245) target = $region12
    $region11: #{_lambda_.1} parent=5 // pred_region
      %s249 = ssub.s32 %s15, 1
      // Predicated region
      $region13: #{_lambda_.1} parent=11 // pred_check
        %p250 = pneg %p62
      $region14: #{_lambda_.1} parent=11 // pred_check_branch
        %252 = sbr.rel (%p250) target = $region16
      $region15: #{_lambda_.1} parent=11 // pred_region
        _
      $region16: #{_lambda_.1} parent=11 // pred_fallthru
        _
      // Predicated region
      $region17: #{_lambda_.1} parent=11 // pred_check
        %p253 = pneg %p83
      $region18: #{_lambda_.1} parent=11 // pred_check_branch
        %255 = sbr.rel (%p253) target = $region20
      $region19: #{_lambda_.1} parent=11 // pred_region
        _
      $region20: #{_lambda_.1} parent=11 // pred_fallthru
        _
      // Predicated region
      $region21: #{_lambda_.1} parent=11 // pred_check
        %p256 = pneg %p104
      $region22: #{_lambda_.1} parent=11 // pred_check_branch
        %258 = sbr.rel (%p256) target = $region24
      $region23: #{_lambda_.1} parent=11 // pred_region
        _
      $region24: #{_lambda_.1} parent=11 // pred_fallthru
        _
      // Predicated region
      $region25: #{_lambda_.1} parent=11 // pred_check
        %p259 = pneg %p125
      $region26: #{_lambda_.1} parent=11 // pred_check_branch
        %261 = sbr.rel (%p259) target = $region28
      $region27: #{_lambda_.1} parent=11 // pred_region
        _
      $region28: #{_lambda_.1} parent=11 // pred_fallthru
        _
      // Predicated region
      $region29: #{_lambda_.1} parent=11 // pred_check
        %p262 = pneg %p146
      $region30: #{_lambda_.1} parent=11 // pred_check_branch
        %264 = sbr.rel (%p262) target = $region32
      $region31: #{_lambda_.1} parent=11 // pred_region
        _
      $region32: #{_lambda_.1} parent=11 // pred_fallthru
        _
      // Predicated region
      $region33: #{_lambda_.1} parent=11 // pred_check
        %p265 = pneg %p167
      $region34: #{_lambda_.1} parent=11 // pred_check_branch
        %267 = sbr.rel (%p265) target = $region36
      $region35: #{_lambda_.1} parent=11 // pred_region
        _
      $region36: #{_lambda_.1} parent=11 // pred_fallthru
        _
      // Predicated region
      $region37: #{_lambda_.1} parent=11 // pred_check
        %p268 = pneg %p188
      $region38: #{_lambda_.1} parent=11 // pred_check_branch
        %270 = sbr.rel (%p268) target = $region40
      $region39: #{_lambda_.1} parent=11 // pred_region
        _
      $region40: #{_lambda_.1} parent=11 // pred_fallthru
        _
      // Predicated region
      $region41: #{_lambda_.1} parent=11 // pred_check
        %p271 = pneg %p209
      $region42: #{_lambda_.1} parent=11 // pred_check_branch
        %273 = sbr.rel (%p271) target = $region44
      $region43: #{_lambda_.1} parent=11 // pred_region
        _
      $region44: #{_lambda_.1} parent=11 // pred_fallthru
        _
    $region12: #{_lambda_.1} parent=5 // pred_fallthru
      _
    %p274 = scmp.lt.s32.totalorder %s15, 3
    // Predicated region
    $region45: #{_lambda_.1} parent=5 // pred_check
      %p275 = pneg %p274
    $region46: #{_lambda_.1} parent=5 // pred_check_branch
      %277 = sbr.rel (%p275) target = $region48
    $region47: #{_lambda_.1} parent=5 // pred_region
      // Predicated region
      $region49: #{_lambda_.1} parent=47 // pred_check
        %p278 = pneg %p35
      $region50: #{_lambda_.1} parent=47 // pred_check_branch
        %280 = sbr.rel (%p278) target = $region52
      $region51: #{_lambda_.1} parent=47 // pred_region
        %s281 = smul.u32 16, %s15
        %p282 = scmp.lt.s32.totalorder %s281, 47
        %s283 = scalar_select %p282, %s281, 47
        %s284 = smul.addr %s283, 4
        %s285 = scalar_lea.vmem %s0, %s284
        %s286 = smul.u32 16, %s15
      $region52: #{_lambda_.1} parent=47 // pred_fallthru
        _
    $region48: #{_lambda_.1} parent=5 // pred_fallthru
      _
    %p287 = scmp.le.s32.totalorder 1, %s15
    %p288 = scmp.lt.s32.totalorder %s15, 4
    %p289 = pnand %p287, %p288
    %p290 = pneg %p289
    // Predicated region
    $region53: #{_lambda_.1} parent=5 // pred_check
      _
    $region54: #{_lambda_.1} parent=5 // pred_check_branch
      %292 = sbr.rel (%p289) target = $region56
    $region55: #{_lambda_.1} parent=5 // pred_region
      %s293 = ssub.s32 %s15, 1
      %s294 = smul.u32 16, %s20
      %p295 = scmp.lt.s32.totalorder %s294, 47
      %s296 = scalar_select %p295, %s294, 47
      %s297 = smul.addr %s296, 4
      %s298 = scalar_lea.vmem %s0, %s297
      %p299 = pneg %p41
      %p300 = pneg %p38
      %p301 = pneg %p62
      %p302 = pneg %p59
      %p303 = pneg %p83
      %p304 = pneg %p80
      %p305 = pneg %p104
      %p306 = pneg %p101
      %p307 = pneg %p125
      %p308 = pneg %p122
      %p309 = pneg %p146
      %p310 = pneg %p143
      %p311 = pneg %p167
      %p312 = pneg %p164
      %p313 = pneg %p188
      %p314 = pneg %p185
      %p315 = pneg %p209
      %p316 = pneg %p206
      %p317 = pneg %p235
      %p318 = pneg %p232
      %p319 = scmp.lt.s32.totalorder %s20, 2
      %s320 = scalar_select %p319, %s20, 2
      %s321 = smul.addr %s320, 8
      %s322 = scalar_lea.vmem %s9, %s321
      %s323 = smul.u32 16, %s20
      %p324 = scmp.lt.s32.totalorder %s323, 47
      %s325 = scalar_select %p324, %s323, 47
      %s326 = smul.addr %s325, 4
      %s327 = scalar_lea.vmem %s0, %s326
      %s328 = smul.u32 16, %s20
      %p329 = scmp.lt.s32.totalorder %s20, 2
      %s330 = scalar_select %p329, %s20, 2
      %s331 = smul.addr %s330, 8
      %s332 = scalar_lea.vmem %s9, %s331
      %v334 = vld [vmem:[%s327] sm:$0xf]
      %v335 = vld [vmem:[%s327 + $0x4] sm:$0xf]
      %v336 = vld [vmem:[%s327 + $0x8] sm:$0xf]
      %v337 = vld [vmem:[%s327 + $0xc] sm:$0xf]
      %v338 = vld [vmem:[%s327 + $0x10] sm:$0xf]
      %v339 = vld [vmem:[%s327 + $0x14] sm:$0xf]
      %v340 = vld [vmem:[%s327 + $0x18] sm:$0xf]
      %v341 = vld [vmem:[%s327 + $0x1c] sm:$0xf]
      %v342 = vld [vmem:[%s327 + $0x20] sm:$0xf]
      %v343 = vld [vmem:[%s327 + $0x24] sm:$0xf]
      %v344 = vld [vmem:[%s327 + $0x28] sm:$0xf]
      %v345 = vld [vmem:[%s327 + $0x2c] sm:$0xf]
      %v346 = vld [vmem:[%s327 + $0x30] sm:$0xf]
      %v347 = vld [vmem:[%s327 + $0x34] sm:$0xf]
      %v348 = vld [vmem:[%s327 + $0x38] sm:$0xf]
      %v349 = vld [vmem:[%s327 + $0x3c] sm:$0xf]
      %v350 = vld [vmem:[%s1] sm:$0xf]
      %v351 = vld [vmem:[%s1 + $0x4] sm:$0xf]
      %v352 = vld [vmem:[%s1 + $0x8] sm:$0xf]
      %v353 = vld [vmem:[%s1 + $0xc] sm:$0xf]
      %v354 = vld [vmem:[%s1 + $0x10] sm:$0xf]
      %v355 = vld [vmem:[%s1 + $0x14] sm:$0xf]
      %v356 = vld [vmem:[%s1 + $0x18] sm:$0xf]
      %v357 = vld [vmem:[%s1 + $0x1c] sm:$0xf]
      %v358 = vld [vmem:[%s1 + $0x20] sm:$0xf]
      %v359 = vld [vmem:[%s1 + $0x24] sm:$0xf]
      %v360 = vld [vmem:[%s1 + $0x28] sm:$0xf]
      %v361 = vld [vmem:[%s1 + $0x2c] sm:$0xf]
      %v362 = vld [vmem:[%s1 + $0x30] sm:$0xf]
      %v363 = vld [vmem:[%s1 + $0x34] sm:$0xf]
      %v364 = vld [vmem:[%s1 + $0x38] sm:$0xf]
      %v365 = vld [vmem:[%s1 + $0x3c] sm:$0xf]
      %v366 = vld [vmem:[%s2] sm:$0x1]
      %v368 = vlaneseq
      %v369 = vshrl.u32 %v368, 7
      %v370 = vsub.s32 0, %v369
      %v371 = vrot.slane %v366, %v370
      %v389 = vunpack.c.l.b16 %v334
      %v390 = vunpack.c.l.b16 %v335
      %v391 = vunpack.c.l.b16 %v336
      %v392 = vunpack.c.l.b16 %v337
      %v393 = vunpack.c.l.b16 %v338
      %v394 = vunpack.c.l.b16 %v339
      %v395 = vunpack.c.l.b16 %v340
      %v396 = vunpack.c.l.b16 %v341
      %v397 = vunpack.c.l.b16 %v342
      %v398 = vunpack.c.l.b16 %v343
      %v399 = vunpack.c.l.b16 %v344
      %v400 = vunpack.c.l.b16 %v345
      %v401 = vunpack.c.l.b16 %v346
      %v402 = vunpack.c.l.b16 %v347
      %v403 = vunpack.c.l.b16 %v348
      %v404 = vunpack.c.l.b16 %v349
      %v405 = vpack.c.b16 %v390, %v389
      %v406 = vpack.c.b16 %v392, %v391
      %v407 = vpack.c.b16 %v394, %v393
      %v408 = vpack.c.b16 %v396, %v395
      %v409 = vpack.c.b16 %v398, %v397
      %v410 = vpack.c.b16 %v400, %v399
      %v411 = vpack.c.b16 %v402, %v401
      %v412 = vpack.c.b16 %v404, %v403
      %v437 = vunpack.c.l.b16 %v350
      %v438 = vunpack.c.l.b16 %v351
      %v439 = vunpack.c.l.b16 %v352
      %v440 = vunpack.c.l.b16 %v353
      %v441 = vunpack.c.l.b16 %v354
      %v442 = vunpack.c.l.b16 %v355
      %v443 = vunpack.c.l.b16 %v356
      %v444 = vunpack.c.l.b16 %v357
      %v445 = vunpack.c.l.b16 %v358
      %v446 = vunpack.c.l.b16 %v359
      %v447 = vunpack.c.l.b16 %v360
      %v448 = vunpack.c.l.b16 %v361
      %v449 = vunpack.c.l.b16 %v362
      %v450 = vunpack.c.l.b16 %v363
      %v451 = vunpack.c.l.b16 %v364
      %v452 = vunpack.c.l.b16 %v365
      %v453 = vpack.c.b16 %v438, %v437
      %v454 = vpack.c.b16 %v440, %v439
      %v455 = vpack.c.b16 %v442, %v441
      %v456 = vpack.c.b16 %v444, %v443
      %v457 = vpack.c.b16 %v446, %v445
      %v458 = vpack.c.b16 %v448, %v447
      %v459 = vpack.c.b16 %v450, %v449
      %v460 = vpack.c.b16 %v452, %v451
      %469 = vmatprep.subr.bf16.mxu0 0
      %470 = vmatpush1.bf16.msra.mxu0 %v453
      %471 = vmatprep.subr.bf16.mxu0 0
      %472 = vmatpush1.bf16.msra.mxu0 %v454
      %473 = vmatprep.subr.bf16.mxu0 0
      %474 = vmatpush1.bf16.msra.mxu0 %v455
      %475 = vmatprep.subr.bf16.mxu0 0
      %476 = vmatpush1.bf16.msra.mxu0 %v456
      %477 = vmatprep.subr.bf16.mxu0 0
      %478 = vmatpush1.bf16.msra.mxu0 %v457
      %479 = vmatprep.subr.bf16.mxu0 0
      %480 = vmatpush1.bf16.msra.mxu0 %v458
      %481 = vmatprep.subr.bf16.mxu0 0
      %482 = vmatpush1.bf16.msra.mxu0 %v459
      %483 = vmatprep.subr.bf16.mxu0 0
      %484 = vmatpush1.bf16.msra.mxu0 %v460
      %485 = vmatprep.subr.bf16.mxu0 0
      %486 = vmatpush1.bf16.msra.mxu0 0
      %487 = vmatprep.subr.bf16.mxu0 0
      %488 = vmatpush1.bf16.msra.mxu0 0
      %489 = vmatprep.subr.bf16.mxu0 0
      %490 = vmatpush1.bf16.msra.mxu0 0
      %491 = vmatprep.subr.bf16.mxu0 0
      %492 = vmatpush1.bf16.msra.mxu0 0
      %493 = vmatprep.subr.bf16.mxu0 0
      %494 = vmatpush1.bf16.msra.mxu0 0
      %495 = vmatprep.subr.bf16.mxu0 0
      %496 = vmatpush1.bf16.msra.mxu0 0
      %497 = vmatprep.subr.bf16.mxu0 0
      %498 = vmatpush1.bf16.msra.mxu0 0
      %499 = vmatprep.subr.bf16.mxu0 0
      %500 = vmatpush1.bf16.msra.mxu0 0
      %501 = vmatprep.mubr.bf16.mxu0 0
      %502 = vmatmul.mubr.bf16.gmra.mrb[0].mxu0 %v405
      %v503 = vpop.f32.mrb[0].mxu0
      %v504 = vadd.f32 %v371, %v503
      %v505 = vpop.f32.mrb[0].mxu0
      %v506 = vpop.f32.mrb[0].mxu0
      %v507 = vadd.f32 %v371, %v506
      %v508 = vpop.f32.mrb[0].mxu0
      %509 = vmatprep.mubr.bf16.mxu0 0
      %510 = vmatmul.mubr.bf16.gmra.mrb[0].mxu0 %v406
      %v511 = vpop.f32.mrb[0].mxu0
      %v512 = vadd.f32 %v371, %v511
      %v513 = vpop.f32.mrb[0].mxu0
      %v514 = vpop.f32.mrb[0].mxu0
      %v515 = vadd.f32 %v371, %v514
      %v516 = vpop.f32.mrb[0].mxu0
      %517 = vmatprep.mubr.bf16.mxu0 0
      %518 = vmatmul.mubr.bf16.gmra.mrb[0].mxu0 %v407
      %v519 = vpop.f32.mrb[0].mxu0
      %v520 = vadd.f32 %v371, %v519
      %v521 = vpop.f32.mrb[0].mxu0
      %v522 = vpop.f32.mrb[0].mxu0
      %v523 = vadd.f32 %v371, %v522
      %v524 = vpop.f32.mrb[0].mxu0
      %525 = vmatprep.mubr.bf16.mxu0 0
      %526 = vmatmul.mubr.bf16.gmra.mrb[0].mxu0 %v408
      %v527 = vpop.f32.mrb[0].mxu0
      %v528 = vadd.f32 %v371, %v527
      %v529 = vpop.f32.mrb[0].mxu0
      %v530 = vpop.f32.mrb[0].mxu0
      %v531 = vadd.f32 %v371, %v530
      %v532 = vpop.f32.mrb[0].mxu0
      %533 = vmatprep.mubr.bf16.mxu0 0
      %534 = vmatmul.mubr.bf16.gmra.mrb[0].mxu0 %v409
      %v535 = vpop.f32.mrb[0].mxu0
      %v536 = vadd.f32 %v371, %v535
      %v537 = vpop.f32.mrb[0].mxu0
      %v538 = vpop.f32.mrb[0].mxu0
      %v539 = vadd.f32 %v371, %v538
      %v540 = vpop.f32.mrb[0].mxu0
      %541 = vmatprep.mubr.bf16.mxu0 0
      %542 = vmatmul.mubr.bf16.gmra.mrb[0].mxu0 %v410
      %v543 = vpop.f32.mrb[0].mxu0
      %v544 = vadd.f32 %v371, %v543
      %v545 = vpop.f32.mrb[0].mxu0
      %v546 = vpop.f32.mrb[0].mxu0
      %v547 = vadd.f32 %v371, %v546
      %v548 = vpop.f32.mrb[0].mxu0
      %549 = vmatprep.mubr.bf16.mxu0 0
      %550 = vmatmul.mubr.bf16.gmra.mrb[0].mxu0 %v411
      %v551 = vpop.f32.mrb[0].mxu0
      %v552 = vadd.f32 %v371, %v551
      %v553 = vpop.f32.mrb[0].mxu0
      %v554 = vpop.f32.mrb[0].mxu0
      %v555 = vadd.f32 %v371, %v554
      %v556 = vpop.f32.mrb[0].mxu0
      %557 = vmatprep.mubr.bf16.mxu0 0
      %558 = vmatmul.mubr.bf16.gmra.mrb[0].mxu0 %v412
      %v559 = vpop.f32.mrb[0].mxu0
      %v560 = vadd.f32 %v371, %v559
      %v561 = vpop.f32.mrb[0].mxu0
      %v562 = vpop.f32.mrb[0].mxu0
      %v563 = vadd.f32 %v371, %v562
      %v564 = vpop.f32.mrb[0].mxu0
      %565 = vdwg.mxu0
      %v566 = vmax.f32 %v504, 0.0
      %v567 = vmax.f32 %v507, 0.0
      %v568 = vmax.f32 %v512, 0.0
      %v569 = vmax.f32 %v515, 0.0
      %v570 = vmax.f32 %v520, 0.0
      %v571 = vmax.f32 %v523, 0.0
      %v572 = vmax.f32 %v528, 0.0
      %v573 = vmax.f32 %v531, 0.0
      %v574 = vmax.f32 %v536, 0.0
      %v575 = vmax.f32 %v539, 0.0
      %v576 = vmax.f32 %v544, 0.0
      %v577 = vmax.f32 %v547, 0.0
      %v578 = vmax.f32 %v552, 0.0
      %v579 = vmax.f32 %v555, 0.0
      %v580 = vmax.f32 %v560, 0.0
      %v581 = vmax.f32 %v563, 0.0
      %v582 = vpack.c.bf16 %v567, %v566
      %v583 = vpack.c.bf16 %v569, %v568
      %v584 = vpack.c.bf16 %v571, %v570
      %v585 = vpack.c.bf16 %v573, %v572
      %v586 = vpack.c.bf16 %v575, %v574
      %v587 = vpack.c.bf16 %v577, %v576
      %v588 = vpack.c.bf16 %v579, %v578
      %v589 = vpack.c.bf16 %v581, %v580
      %v590 = vld [vmem:[%s3] sm:$0xf]
      %v591 = vld [vmem:[%s3 + $0x4] sm:$0xf]
      %v592 = vld [vmem:[%s3 + $0x8] sm:$0xf]
      %v593 = vld [vmem:[%s3 + $0xc] sm:$0xf]
      %v594 = vld [vmem:[%s3 + $0x10] sm:$0xf]
      %v595 = vld [vmem:[%s3 + $0x14] sm:$0xf]
      %v596 = vld [vmem:[%s3 + $0x18] sm:$0xf]
      %v597 = vld [vmem:[%s3 + $0x1c] sm:$0xf]
      %v598 = vld [vmem:[%s3 + $0x20] sm:$0xf]
      %v599 = vld [vmem:[%s3 + $0x24] sm:$0xf]
      %v600 = vld [vmem:[%s3 + $0x28] sm:$0xf]
      %v601 = vld [vmem:[%s3 + $0x2c] sm:$0xf]
      %v602 = vld [vmem:[%s3 + $0x30] sm:$0xf]
      %v603 = vld [vmem:[%s3 + $0x34] sm:$0xf]
      %v604 = vld [vmem:[%s3 + $0x38] sm:$0xf]
      %v605 = vld [vmem:[%s3 + $0x3c] sm:$0xf]
      %v606 = vld [vmem:[%s4] sm:$0x1]
      %v608 = vlaneseq
      %v609 = vshrl.u32 %v608, 7
      %v610 = vsub.s32 0, %v609
      %v611 = vrot.slane %v606, %v610
      %v629 = vunpack.c.l.b16 %v590
      %v630 = vunpack.c.l.b16 %v591
      %v631 = vunpack.c.l.b16 %v592
      %v632 = vunpack.c.l.b16 %v593
      %v633 = vunpack.c.l.b16 %v594
      %v634 = vunpack.c.l.b16 %v595
      %v635 = vunpack.c.l.b16 %v596
      %v636 = vunpack.c.l.b16 %v597
      %v637 = vunpack.c.l.b16 %v598
      %v638 = vunpack.c.l.b16 %v599
      %v639 = vunpack.c.l.b16 %v600
      %v640 = vunpack.c.l.b16 %v601
      %v641 = vunpack.c.l.b16 %v602
      %v642 = vunpack.c.l.b16 %v603
      %v643 = vunpack.c.l.b16 %v604
      %v644 = vunpack.c.l.b16 %v605
      %v645 = vpack.c.b16 %v630, %v629
      %v646 = vpack.c.b16 %v632, %v631
      %v647 = vpack.c.b16 %v634, %v633
      %v648 = vpack.c.b16 %v636, %v635
      %v649 = vpack.c.b16 %v638, %v637
      %v650 = vpack.c.b16 %v640, %v639
      %v651 = vpack.c.b16 %v642, %v641
      %v652 = vpack.c.b16 %v644, %v643
      %661 = vmatprep.subr.bf16.mxu0 0
      %662 = vmatpush1.bf16.msra.mxu0 %v645
      %663 = vmatprep.subr.bf16.mxu0 0
      %664 = vmatpush1.bf16.msra.mxu0 %v646
      %665 = vmatprep.subr.bf16.mxu0 0
      %666 = vmatpush1.bf16.msra.mxu0 %v647
      %667 = vmatprep.subr.bf16.mxu0 0
      %668 = vmatpush1.bf16.msra.mxu0 %v648
      %669 = vmatprep.subr.bf16.mxu0 0
      %670 = vmatpush1.bf16.msra.mxu0 %v649
      %671 = vmatprep.subr.bf16.mxu0 0
      %672 = vmatpush1.bf16.msra.mxu0 %v650
      %673 = vmatprep.subr.bf16.mxu0 0
      %674 = vmatpush1.bf16.msra.mxu0 %v651
      %675 = vmatprep.subr.bf16.mxu0 0
      %676 = vmatpush1.bf16.msra.mxu0 %v652
      %677 = vmatprep.subr.bf16.mxu0 0
      %678 = vmatpush1.bf16.msra.mxu0 0
      %679 = vmatprep.subr.bf16.mxu0 0
      %680 = vmatpush1.bf16.msra.mxu0 0
      %681 = vmatprep.subr.bf16.mxu0 0
      %682 = vmatpush1.bf16.msra.mxu0 0
      %683 = vmatprep.subr.bf16.mxu0 0
      %684 = vmatpush1.bf16.msra.mxu0 0
      %685 = vmatprep.subr.bf16.mxu0 0
      %686 = vmatpush1.bf16.msra.mxu0 0
      %687 = vmatprep.subr.bf16.mxu0 0
      %688 = vmatpush1.bf16.msra.mxu0 0
      %689 = vmatprep.subr.bf16.mxu0 0
      %690 = vmatpush1.bf16.msra.mxu0 0
      %691 = vmatprep.subr.bf16.mxu0 0
      %692 = vmatpush1.bf16.msra.mxu0 0
      %693 = vmatprep.mubr.bf16.mxu0 0
      %694 = vmatmul.mubr.bf16.gmra.mrb[0].mxu0 %v582
      %v695 = vpop.f32.mrb[0].mxu0
      %v696 = vadd.f32 %v611, %v695
      %v697 = vpop.f32.mrb[0].mxu0
      %v698 = vpop.f32.mrb[0].mxu0
      %v699 = vadd.f32 %v611, %v698
      %v700 = vpop.f32.mrb[0].mxu0
      %701 = vmatprep.mubr.bf16.mxu0 0
      %702 = vmatmul.mubr.bf16.gmra.mrb[0].mxu0 %v583
      %v703 = vpop.f32.mrb[0].mxu0
      %v704 = vadd.f32 %v611, %v703
      %v705 = vpop.f32.mrb[0].mxu0
      %v706 = vpop.f32.mrb[0].mxu0
      %v707 = vadd.f32 %v611, %v706
      %v708 = vpop.f32.mrb[0].mxu0
      %709 = vmatprep.mubr.bf16.mxu0 0
      %710 = vmatmul.mubr.bf16.gmra.mrb[0].mxu0 %v584
      %v711 = vpop.f32.mrb[0].mxu0
      %v712 = vadd.f32 %v611, %v711
      %v713 = vpop.f32.mrb[0].mxu0
      %v714 = vpop.f32.mrb[0].mxu0
      %v715 = vadd.f32 %v611, %v714
      %v716 = vpop.f32.mrb[0].mxu0
      %717 = vmatprep.mubr.bf16.mxu0 0
      %718 = vmatmul.mubr.bf16.gmra.mrb[0].mxu0 %v585
      %v719 = vpop.f32.mrb[0].mxu0
      %v720 = vadd.f32 %v611, %v719
      %v721 = vpop.f32.mrb[0].mxu0
      %v722 = vpop.f32.mrb[0].mxu0
      %v723 = vadd.f32 %v611, %v722
      %v724 = vpop.f32.mrb[0].mxu0
      %725 = vmatprep.mubr.bf16.mxu0 0
      %726 = vmatmul.mubr.bf16.gmra.mrb[0].mxu0 %v586
      %v727 = vpop.f32.mrb[0].mxu0
      %v728 = vadd.f32 %v611, %v727
      %v729 = vpop.f32.mrb[0].mxu0
      %v730 = vpop.f32.mrb[0].mxu0
      %v731 = vadd.f32 %v611, %v730
      %v732 = vpop.f32.mrb[0].mxu0
      %733 = vmatprep.mubr.bf16.mxu0 0
      %734 = vmatmul.mubr.bf16.gmra.mrb[0].mxu0 %v587
      %v735 = vpop.f32.mrb[0].mxu0
      %v736 = vadd.f32 %v611, %v735
      %v737 = vpop.f32.mrb[0].mxu0
      %v738 = vpop.f32.mrb[0].mxu0
      %v739 = vadd.f32 %v611, %v738
      %v740 = vpop.f32.mrb[0].mxu0
      %741 = vmatprep.mubr.bf16.mxu0 0
      %742 = vmatmul.mubr.bf16.gmra.mrb[0].mxu0 %v588
      %v743 = vpop.f32.mrb[0].mxu0
      %v744 = vadd.f32 %v611, %v743
      %v745 = vpop.f32.mrb[0].mxu0
      %v746 = vpop.f32.mrb[0].mxu0
      %v747 = vadd.f32 %v611, %v746
      %v748 = vpop.f32.mrb[0].mxu0
      %749 = vmatprep.mubr.bf16.mxu0 0
      %750 = vmatmul.mubr.bf16.gmra.mrb[0].mxu0 %v589
      %v751 = vpop.f32.mrb[0].mxu0
      %v752 = vadd.f32 %v611, %v751
      %v753 = vpop.f32.mrb[0].mxu0
      %v754 = vpop.f32.mrb[0].mxu0
      %v755 = vadd.f32 %v611, %v754
      %v756 = vpop.f32.mrb[0].mxu0
      %757 = vdwg.mxu0
      %v758 = vmax.f32 %v696, 0.0
      %v759 = vmax.f32 %v699, 0.0
      %v760 = vmax.f32 %v704, 0.0
      %v761 = vmax.f32 %v707, 0.0
      %v762 = vmax.f32 %v712, 0.0
      %v763 = vmax.f32 %v715, 0.0
      %v764 = vmax.f32 %v720, 0.0
      %v765 = vmax.f32 %v723, 0.0
      %v766 = vmax.f32 %v728, 0.0
      %v767 = vmax.f32 %v731, 0.0
      %v768 = vmax.f32 %v736, 0.0
      %v769 = vmax.f32 %v739, 0.0
      %v770 = vmax.f32 %v744, 0.0
      %v771 = vmax.f32 %v747, 0.0
      %v772 = vmax.f32 %v752, 0.0
      %v773 = vmax.f32 %v755, 0.0
      %v774 = vpack.c.bf16 %v759, %v758
      %v775 = vpack.c.bf16 %v761, %v760
      %v776 = vpack.c.bf16 %v763, %v762
      %v777 = vpack.c.bf16 %v765, %v764
      %v778 = vpack.c.bf16 %v767, %v766
      %v779 = vpack.c.bf16 %v769, %v768
      %v780 = vpack.c.bf16 %v771, %v770
      %v781 = vpack.c.bf16 %v773, %v772
      %v782 = vld [vmem:[%s5] sm:$0xf]
      %v783 = vld [vmem:[%s5 + $0x4] sm:$0xf]
      %v784 = vld [vmem:[%s5 + $0x8] sm:$0xf]
      %v785 = vld [vmem:[%s5 + $0xc] sm:$0xf]
      %v786 = vld [vmem:[%s5 + $0x10] sm:$0xf]
      %v787 = vld [vmem:[%s5 + $0x14] sm:$0xf]
      %v788 = vld [vmem:[%s5 + $0x18] sm:$0xf]
      %v789 = vld [vmem:[%s5 + $0x1c] sm:$0xf]
      %v790 = vld [vmem:[%s5 + $0x20] sm:$0xf]
      %v791 = vld [vmem:[%s5 + $0x24] sm:$0xf]
      %v792 = vld [vmem:[%s5 + $0x28] sm:$0xf]
      %v793 = vld [vmem:[%s5 + $0x2c] sm:$0xf]
      %v794 = vld [vmem:[%s5 + $0x30] sm:$0xf]
      %v795 = vld [vmem:[%s5 + $0x34] sm:$0xf]
      %v796 = vld [vmem:[%s5 + $0x38] sm:$0xf]
      %v797 = vld [vmem:[%s5 + $0x3c] sm:$0xf]
      %v798 = vld [vmem:[%s6] sm:$0x1]
      %v800 = vlaneseq
      %v801 = vshrl.u32 %v800, 7
      %v802 = vsub.s32 0, %v801
      %v803 = vrot.slane %v798, %v802
      %v821 = vunpack.c.l.b16 %v782
      %v822 = vunpack.c.l.b16 %v783
      %v823 = vunpack.c.l.b16 %v784
      %v824 = vunpack.c.l.b16 %v785
      %v825 = vunpack.c.l.b16 %v786
      %v826 = vunpack.c.l.b16 %v787
      %v827 = vunpack.c.l.b16 %v788
      %v828 = vunpack.c.l.b16 %v789
      %v829 = vunpack.c.l.b16 %v790
      %v830 = vunpack.c.l.b16 %v791
      %v831 = vunpack.c.l.b16 %v792
      %v832 = vunpack.c.l.b16 %v793
      %v833 = vunpack.c.l.b16 %v794
      %v834 = vunpack.c.l.b16 %v795
      %v835 = vunpack.c.l.b16 %v796
      %v836 = vunpack.c.l.b16 %v797
      %v837 = vpack.c.b16 %v822, %v821
      %v838 = vpack.c.b16 %v824, %v823
      %v839 = vpack.c.b16 %v826, %v825
      %v840 = vpack.c.b16 %v828, %v827
      %v841 = vpack.c.b16 %v830, %v829
      %v842 = vpack.c.b16 %v832, %v831
      %v843 = vpack.c.b16 %v834, %v833
      %v844 = vpack.c.b16 %v836, %v835
      %853 = vmatprep.subr.bf16.mxu0 0
      %854 = vmatpush1.bf16.msra.mxu0 %v837
      %855 = vmatprep.subr.bf16.mxu0 0
      %856 = vmatpush1.bf16.msra.mxu0 %v838
      %857 = vmatprep.subr.bf16.mxu0 0
      %858 = vmatpush1.bf16.msra.mxu0 %v839
      %859 = vmatprep.subr.bf16.mxu0 0
      %860 = vmatpush1.bf16.msra.mxu0 %v840
      %861 = vmatprep.subr.bf16.mxu0 0
      %862 = vmatpush1.bf16.msra.mxu0 %v841
      %863 = vmatprep.subr.bf16.mxu0 0
      %864 = vmatpush1.bf16.msra.mxu0 %v842
      %865 = vmatprep.subr.bf16.mxu0 0
      %866 = vmatpush1.bf16.msra.mxu0 %v843
      %867 = vmatprep.subr.bf16.mxu0 0
      %868 = vmatpush1.bf16.msra.mxu0 %v844
      %869 = vmatprep.subr.bf16.mxu0 0
      %870 = vmatpush1.bf16.msra.mxu0 0
      %871 = vmatprep.subr.bf16.mxu0 0
      %872 = vmatpush1.bf16.msra.mxu0 0
      %873 = vmatprep.subr.bf16.mxu0 0
      %874 = vmatpush1.bf16.msra.mxu0 0
      %875 = vmatprep.subr.bf16.mxu0 0
      %876 = vmatpush1.bf16.msra.mxu0 0
      %877 = vmatprep.subr.bf16.mxu0 0
      %878 = vmatpush1.bf16.msra.mxu0 0
      %879 = vmatprep.subr.bf16.mxu0 0
      %880 = vmatpush1.bf16.msra.mxu0 0
      %881 = vmatprep.subr.bf16.mxu0 0
      %882 = vmatpush1.bf16.msra.mxu0 0
      %883 = vmatprep.subr.bf16.mxu0 0
      %884 = vmatpush1.bf16.msra.mxu0 0
      %885 = vmatprep.mubr.bf16.mxu0 0
      %886 = vmatmul.mubr.bf16.gmra.mrb[0].mxu0 %v774
      %v887 = vpop.f32.mrb[0].mxu0
      %v888 = vadd.f32 %v803, %v887
      %v889 = vpop.f32.mrb[0].mxu0
      %v890 = vpop.f32.mrb[0].mxu0
      %v891 = vadd.f32 %v803, %v890
      %v892 = vpop.f32.mrb[0].mxu0
      %893 = vmatprep.mubr.bf16.mxu0 0
      %894 = vmatmul.mubr.bf16.gmra.mrb[0].mxu0 %v775
      %v895 = vpop.f32.mrb[0].mxu0
      %v896 = vadd.f32 %v803, %v895
      %v897 = vpop.f32.mrb[0].mxu0
      %v898 = vpop.f32.mrb[0].mxu0
      %v899 = vadd.f32 %v803, %v898
      %v900 = vpop.f32.mrb[0].mxu0
      %901 = vmatprep.mubr.bf16.mxu0 0
      %902 = vmatmul.mubr.bf16.gmra.mrb[0].mxu0 %v776
      %v903 = vpop.f32.mrb[0].mxu0
      %v904 = vadd.f32 %v803, %v903
      %v905 = vpop.f32.mrb[0].mxu0
      %v906 = vpop.f32.mrb[0].mxu0
      %v907 = vadd.f32 %v803, %v906
      %v908 = vpop.f32.mrb[0].mxu0
      %909 = vmatprep.mubr.bf16.mxu0 0
      %910 = vmatmul.mubr.bf16.gmra.mrb[0].mxu0 %v777
      %v911 = vpop.f32.mrb[0].mxu0
      %v912 = vadd.f32 %v803, %v911
      %v913 = vpop.f32.mrb[0].mxu0
      %v914 = vpop.f32.mrb[0].mxu0
      %v915 = vadd.f32 %v803, %v914
      %v916 = vpop.f32.mrb[0].mxu0
      %917 = vmatprep.mubr.bf16.mxu0 0
      %918 = vmatmul.mubr.bf16.gmra.mrb[0].mxu0 %v778
      %v919 = vpop.f32.mrb[0].mxu0
      %v920 = vadd.f32 %v803, %v919
      %v921 = vpop.f32.mrb[0].mxu0
      %v922 = vpop.f32.mrb[0].mxu0
      %v923 = vadd.f32 %v803, %v922
      %v924 = vpop.f32.mrb[0].mxu0
      %925 = vmatprep.mubr.bf16.mxu0 0
      %926 = vmatmul.mubr.bf16.gmra.mrb[0].mxu0 %v779
      %v927 = vpop.f32.mrb[0].mxu0
      %v928 = vadd.f32 %v803, %v927
      %v929 = vpop.f32.mrb[0].mxu0
      %v930 = vpop.f32.mrb[0].mxu0
      %v931 = vadd.f32 %v803, %v930
      %v932 = vpop.f32.mrb[0].mxu0
      %933 = vmatprep.mubr.bf16.mxu0 0
      %934 = vmatmul.mubr.bf16.gmra.mrb[0].mxu0 %v780
      %v935 = vpop.f32.mrb[0].mxu0
      %v936 = vadd.f32 %v803, %v935
      %v937 = vpop.f32.mrb[0].mxu0
      %v938 = vpop.f32.mrb[0].mxu0
      %v939 = vadd.f32 %v803, %v938
      %v940 = vpop.f32.mrb[0].mxu0
      %941 = vmatprep.mubr.bf16.mxu0 0
      %942 = vmatmul.mubr.bf16.gmra.mrb[0].mxu0 %v781
      %v943 = vpop.f32.mrb[0].mxu0
      %v944 = vadd.f32 %v803, %v943
      %v945 = vpop.f32.mrb[0].mxu0
      %v946 = vpop.f32.mrb[0].mxu0
      %v947 = vadd.f32 %v803, %v946
      %v948 = vpop.f32.mrb[0].mxu0
      %949 = vdwg.mxu0
      %v950 = vmax.f32 %v888, 0.0
      %v951 = vmax.f32 %v891, 0.0
      %v952 = vmax.f32 %v896, 0.0
      %v953 = vmax.f32 %v899, 0.0
      %v954 = vmax.f32 %v904, 0.0
      %v955 = vmax.f32 %v907, 0.0
      %v956 = vmax.f32 %v912, 0.0
      %v957 = vmax.f32 %v915, 0.0
      %v958 = vmax.f32 %v920, 0.0
      %v959 = vmax.f32 %v923, 0.0
      %v960 = vmax.f32 %v928, 0.0
      %v961 = vmax.f32 %v931, 0.0
      %v962 = vmax.f32 %v936, 0.0
      %v963 = vmax.f32 %v939, 0.0
      %v964 = vmax.f32 %v944, 0.0
      %v965 = vmax.f32 %v947, 0.0
      %v966 = vpack.c.bf16 %v951, %v950
      %v967 = vpack.c.bf16 %v953, %v952
      %v968 = vpack.c.bf16 %v955, %v954
      %v969 = vpack.c.bf16 %v957, %v956
      %v970 = vpack.c.bf16 %v959, %v958
      %v971 = vpack.c.bf16 %v961, %v960
      %v972 = vpack.c.bf16 %v963, %v962
      %v973 = vpack.c.bf16 %v965, %v964
      %v974 = vld [vmem:[%s7] sm:$0xf]
      %v975 = vld [vmem:[%s7 + $0x4] sm:$0xf]
      %v976 = vld [vmem:[%s7 + $0x8] sm:$0xf]
      %v977 = vld [vmem:[%s7 + $0xc] sm:$0xf]
      %v978 = vld [vmem:[%s7 + $0x10] sm:$0xf]
      %v979 = vld [vmem:[%s7 + $0x14] sm:$0xf]
      %v980 = vld [vmem:[%s7 + $0x18] sm:$0xf]
      %v981 = vld [vmem:[%s7 + $0x1c] sm:$0xf]
      %v982 = vld [vmem:[%s7 + $0x20] sm:$0xf]
      %v983 = vld [vmem:[%s7 + $0x24] sm:$0xf]
      %v984 = vld [vmem:[%s7 + $0x28] sm:$0xf]
      %v985 = vld [vmem:[%s7 + $0x2c] sm:$0xf]
      %v986 = vld [vmem:[%s7 + $0x30] sm:$0xf]
      %v987 = vld [vmem:[%s7 + $0x34] sm:$0xf]
      %v988 = vld [vmem:[%s7 + $0x38] sm:$0xf]
      %v989 = vld [vmem:[%s7 + $0x3c] sm:$0xf]
      %v990 = vld [vmem:[%s8] sm:$0x1]
      %v992 = vlaneseq
      %v993 = vshrl.u32 %v992, 7
      %v994 = vsub.s32 0, %v993
      %v995 = vrot.slane %v990, %v994
      %v1013 = vunpack.c.l.b16 %v974
      %v1014 = vunpack.c.l.b16 %v975
      %v1015 = vunpack.c.l.b16 %v976
      %v1016 = vunpack.c.l.b16 %v977
      %v1017 = vunpack.c.l.b16 %v978
      %v1018 = vunpack.c.l.b16 %v979
      %v1019 = vunpack.c.l.b16 %v980
      %v1020 = vunpack.c.l.b16 %v981
      %v1021 = vunpack.c.l.b16 %v982
      %v1022 = vunpack.c.l.b16 %v983
      %v1023 = vunpack.c.l.b16 %v984
      %v1024 = vunpack.c.l.b16 %v985
      %v1025 = vunpack.c.l.b16 %v986
      %v1026 = vunpack.c.l.b16 %v987
      %v1027 = vunpack.c.l.b16 %v988
      %v1028 = vunpack.c.l.b16 %v989
      %v1029 = vpack.c.b16 %v1014, %v1013
      %v1030 = vpack.c.b16 %v1016, %v1015
      %v1031 = vpack.c.b16 %v1018, %v1017
      %v1032 = vpack.c.b16 %v1020, %v1019
      %v1033 = vpack.c.b16 %v1022, %v1021
      %v1034 = vpack.c.b16 %v1024, %v1023
      %v1035 = vpack.c.b16 %v1026, %v1025
      %v1036 = vpack.c.b16 %v1028, %v1027
      %1045 = vmatprep.subr.bf16.mxu0 0
      %1046 = vmatpush1.bf16.msra.mxu0 %v1029
      %1047 = vmatprep.subr.bf16.mxu0 0
      %1048 = vmatpush1.bf16.msra.mxu0 %v1030
      %1049 = vmatprep.subr.bf16.mxu0 0
      %1050 = vmatpush1.bf16.msra.mxu0 %v1031
      %1051 = vmatprep.subr.bf16.mxu0 0
      %1052 = vmatpush1.bf16.msra.mxu0 %v1032
      %1053 = vmatprep.subr.bf16.mxu0 0
      %1054 = vmatpush1.bf16.msra.mxu0 %v1033
      %1055 = vmatprep.subr.bf16.mxu0 0
      %1056 = vmatpush1.bf16.msra.mxu0 %v1034
      %1057 = vmatprep.subr.bf16.mxu0 0
      %1058 = vmatpush1.bf16.msra.mxu0 %v1035
      %1059 = vmatprep.subr.bf16.mxu0 0
      %1060 = vmatpush1.bf16.msra.mxu0 %v1036
      %1061 = vmatprep.subr.bf16.mxu0 0
      %1062 = vmatpush1.bf16.msra.mxu0 0
      %1063 = vmatprep.subr.bf16.mxu0 0
      %1064 = vmatpush1.bf16.msra.mxu0 0
      %1065 = vmatprep.subr.bf16.mxu0 0
      %1066 = vmatpush1.bf16.msra.mxu0 0
      %1067 = vmatprep.subr.bf16.mxu0 0
      %1068 = vmatpush1.bf16.msra.mxu0 0
      %1069 = vmatprep.subr.bf16.mxu0 0
      %1070 = vmatpush1.bf16.msra.mxu0 0
      %1071 = vmatprep.subr.bf16.mxu0 0
      %1072 = vmatpush1.bf16.msra.mxu0 0
      %1073 = vmatprep.subr.bf16.mxu0 0
      %1074 = vmatpush1.bf16.msra.mxu0 0
      %1075 = vmatprep.subr.bf16.mxu0 0
      %1076 = vmatpush1.bf16.msra.mxu0 0
      %1077 = vmatprep.mubr.bf16.mxu0 0
      %1078 = vmatmul.mubr.bf16.gmra.mrb[0].mxu0 %v966
      %v1079 = vpop.f32.mrb[0].mxu0
      %v1080 = vadd.f32 %v995, %v1079
      %v1081 = vpop.f32.mrb[0].mxu0
      %v1082 = vpop.f32.mrb[0].mxu0
      %v1083 = vadd.f32 %v995, %v1082
      %v1084 = vpop.f32.mrb[0].mxu0
      %1085 = vmatprep.mubr.bf16.mxu0 0
      %1086 = vmatmul.mubr.bf16.gmra.mrb[0].mxu0 %v967
      %v1087 = vpop.f32.mrb[0].mxu0
      %v1088 = vadd.f32 %v995, %v1087
      %v1089 = vpop.f32.mrb[0].mxu0
      %v1090 = vpop.f32.mrb[0].mxu0
      %v1091 = vadd.f32 %v995, %v1090
      %v1092 = vpop.f32.mrb[0].mxu0
      %1093 = vmatprep.mubr.bf16.mxu0 0
      %1094 = vmatmul.mubr.bf16.gmra.mrb[0].mxu0 %v968
      %v1095 = vpop.f32.mrb[0].mxu0
      %v1096 = vadd.f32 %v995, %v1095
      %v1097 = vpop.f32.mrb[0].mxu0
      %v1098 = vpop.f32.mrb[0].mxu0
      %v1099 = vadd.f32 %v995, %v1098
      %v1100 = vpop.f32.mrb[0].mxu0
      %1101 = vmatprep.mubr.bf16.mxu0 0
      %1102 = vmatmul.mubr.bf16.gmra.mrb[0].mxu0 %v969
      %v1103 = vpop.f32.mrb[0].mxu0
      %v1104 = vadd.f32 %v995, %v1103
      %v1105 = vpop.f32.mrb[0].mxu0
      %v1106 = vpop.f32.mrb[0].mxu0
      %v1107 = vadd.f32 %v995, %v1106
      %v1108 = vpop.f32.mrb[0].mxu0
      %1109 = vmatprep.mubr.bf16.mxu0 0
      %1110 = vmatmul.mubr.bf16.gmra.mrb[0].mxu0 %v970
      %v1111 = vpop.f32.mrb[0].mxu0
      %v1112 = vadd.f32 %v995, %v1111
      %v1113 = vpop.f32.mrb[0].mxu0
      %v1114 = vpop.f32.mrb[0].mxu0
      %v1115 = vadd.f32 %v995, %v1114
      %v1116 = vpop.f32.mrb[0].mxu0
      %1117 = vmatprep.mubr.bf16.mxu0 0
      %1118 = vmatmul.mubr.bf16.gmra.mrb[0].mxu0 %v971
      %v1119 = vpop.f32.mrb[0].mxu0
      %v1120 = vadd.f32 %v995, %v1119
      %v1121 = vpop.f32.mrb[0].mxu0
      %v1122 = vpop.f32.mrb[0].mxu0
      %v1123 = vadd.f32 %v995, %v1122
      %v1124 = vpop.f32.mrb[0].mxu0
      %1125 = vmatprep.mubr.bf16.mxu0 0
      %1126 = vmatmul.mubr.bf16.gmra.mrb[0].mxu0 %v972
      %v1127 = vpop.f32.mrb[0].mxu0
      %v1128 = vadd.f32 %v995, %v1127
      %v1129 = vpop.f32.mrb[0].mxu0
      %v1130 = vpop.f32.mrb[0].mxu0
      %v1131 = vadd.f32 %v995, %v1130
      %v1132 = vpop.f32.mrb[0].mxu0
      %1133 = vmatprep.mubr.bf16.mxu0 0
      %1134 = vmatmul.mubr.bf16.gmra.mrb[0].mxu0 %v973
      %v1135 = vpop.f32.mrb[0].mxu0
      %v1136 = vadd.f32 %v995, %v1135
      %v1137 = vpop.f32.mrb[0].mxu0
      %v1138 = vpop.f32.mrb[0].mxu0
      %v1139 = vadd.f32 %v995, %v1138
      %v1140 = vpop.f32.mrb[0].mxu0
      %1141 = vdwg.mxu0
      %1142 = vxpose.xlu0.b32.start [1/16] %v1080, 128
      %1143 = vxpose.xlu0.b32.cont [2/16] %v1083, 128
      %1144 = vxpose.xlu0.b32.cont [3/16] %v1088, 128
      %1145 = vxpose.xlu0.b32.cont [4/16] %v1091, 128
      %1146 = vxpose.xlu0.b32.cont [5/16] %v1096, 128
      %1147 = vxpose.xlu0.b32.cont [6/16] %v1099, 128
      %1148 = vxpose.xlu0.b32.cont [7/16] %v1104, 128
      %1149 = vxpose.xlu0.b32.cont [8/16] %v1107, 128
      %1150 = vxpose.xlu0.b32.cont [9/16] %v1112, 128
      %1151 = vxpose.xlu0.b32.cont [10/16] %v1115, 128
      %1152 = vxpose.xlu0.b32.cont [11/16] %v1120, 128
      %1153 = vxpose.xlu0.b32.cont [12/16] %v1123, 128
      %1154 = vxpose.xlu0.b32.cont [13/16] %v1128, 128
      %1155 = vxpose.xlu0.b32.cont [14/16] %v1131, 128
      %1156 = vxpose.xlu0.b32.cont [15/16] %v1136, 128
      %1157 = vxpose.xlu0.b32.end [16/16] %v1139, 128
      %v1158 = vpop.trf.xlu0
      %v1159 = vpop.trf.xlu0
      %v1160 = vpop.trf.xlu0
      %v1161 = vpop.trf.xlu0
      %v1162 = vpop.trf.xlu0
      %v1163 = vpop.trf.xlu0
      %v1164 = vpop.trf.xlu0
      %v1165 = vpop.trf.xlu0
      %v1166 = vpop.trf.xlu0
      %v1167 = vpop.trf.xlu0
      %v1168 = vpop.trf.xlu0
      %v1169 = vpop.trf.xlu0
      %v1170 = vpop.trf.xlu0
      %v1171 = vpop.trf.xlu0
      %v1172 = vpop.trf.xlu0
      %v1173 = vpop.trf.xlu0
      %1174 = vst [vmem:[%s332] sm:$0xff] %v1158
      %p1175 = scmp.lt.s32.totalorder %s20, 2
      %s1176 = scalar_select %p1175, %s20, 2
      %s1177 = smul.addr %s1176, 8
      %s1178 = scalar_lea.vmem %s9, %s1177
      // Predicated region
      $region57: #{_lambda_.1} parent=55 // pred_check
        %p1179 = pneg %p232
      $region58: #{_lambda_.1} parent=55 // pred_check_branch
        %1181 = sbr.rel (%p1179) target = $region60
      $region59: #{_lambda_.1} parent=55 // pred_region
        _
      $region60: #{_lambda_.1} parent=55 // pred_fallthru
        _
    $region56: #{_lambda_.1} parent=5 // pred_fallthru
      _
    %p1182 = scmp.le.s32.totalorder 2, %s15
    // Predicated region
    $region61: #{_lambda_.1} parent=5 // pred_check
      %p1183 = pneg %p1182
    $region62: #{_lambda_.1} parent=5 // pred_check_branch
      %1185 = sbr.rel (%p1183) target = $region64
    $region63: #{_lambda_.1} parent=5 // pred_region
      %s1186 = ssub.s32 %s15, 2
      // Predicated region
      $region65: #{_lambda_.1} parent=63 // pred_check
        %p1187 = pneg %p238
      $region66: #{_lambda_.1} parent=63 // pred_check_branch
        %1189 = sbr.rel (%p1187) target = $region68
      $region67: #{_lambda_.1} parent=63 // pred_region
        %p1190 = scmp.lt.s32.totalorder %s21, 2
        %s1191 = scalar_select %p1190, %s21, 2
        %s1192 = smul.addr %s1191, 8
        %s1193 = scalar_lea.vmem %s9, %s1192
      $region68: #{_lambda_.1} parent=63 // pred_fallthru
        _
    $region64: #{_lambda_.1} parent=5 // pred_fallthru
      _
  $region6: #{_lambda_.1} parent=0 // loop_footer
    %s19 = sadd.s32 1, %s15
  $region7: #{_lambda_.1} parent=0 // loop_footer_branch
    %14 = sbr.rel target = $region3
  $region8: #{_lambda_.1} parent=0 // loop_exit
    _

</llo_original>
